<compile_context>
chip_gen: v7x
topology: tpu7x:2x2x1
jax: 0.10.0
libtpu: 0.0.40
codegen_flags: <defaults>
</compile_context>

<pallas_src>
import functools

import jax
import jax.numpy as jnp
from jax import lax
from jax.experimental import pallas as pl
from jax.experimental.pallas import tpu as pltpu


def _round_up(x, m):
    return (x + m - 1) // m * m


def _tpu_vmem_capacity(default=64 * 1024 * 1024):
    """Per-TensorCore VMEM capacity; conservative 64 MiB (v7x) fallback."""
    try:
        info = pltpu.get_tpu_info()
        cap = int(getattr(info, "vmem_capacity_bytes", default))
        return cap if cap > 0 else default
    except Exception:
        return default


def _i_tile_candidates(inter, max_tile=512):
    """Divisors of `inter` <= max_tile; prefer 256-multiples (v6e/v7x MXU is
    2x256^2), then 128-multiples (lane width / v5e MXU), then any divisor."""
    cap = min(inter, max_tile)
    div = [t for t in range(cap, 0, -1) if inter % t == 0]
    m256 = [t for t in div if t % 256 == 0]
    m128 = [t for t in div if t % 128 == 0 and t % 256 != 0]
    rest = [t for t in div if t % 128 != 0]
    return m256 + m128 + rest


def _working_set_bytes(tt, d, i_tile, w_itemsize, x_itemsize):
    wt = 2 * 3 * d * i_tile * w_itemsize        # w1/w3/w2 tiles, double-buffered
    xo = 2 * 2 * tt * d * x_itemsize            # x in + out tiles, double-buffered
    acc = tt * d * 4                            # fp32 accumulator scratch
    tmp = 3 * tt * i_tile * 4                   # h1 / h3 / silu-product fp32 temps
    return wt + xo + acc + tmp


def _plan_tiles(d, inter, *, w_itemsize=2, x_itemsize=2,
                max_token_tile=512, max_i_tile=512, i_tile=None):
    """Pick (max token tile, i_tile) so the double-buffered working set fits
    ~70% of this chip's VMEM.  Token tile is prioritized: arithmetic intensity
    of the weight-streaming matmuls ~= tt flops/byte."""
    vmem_cap = _tpu_vmem_capacity()
    budget = int(vmem_cap * 0.70)
    i_cands = [i_tile] if i_tile is not None else _i_tile_candidates(inter, max_i_tile)
    tt_cands = [t for t in (512, 384, 256, 192, 128, 64, 32, 16, 8)
                if t <= max_token_tile]
    if not tt_cands:
        tt_cands = [max(8, _round_up(max_token_tile, 8))]
    for tt in tt_cands:
        for it in i_cands:
            if _working_set_bytes(tt, d, it, w_itemsize, x_itemsize) <= budget:
                return tt, it, vmem_cap
    return tt_cands[-1], i_cands[-1], vmem_cap


# ---------------------------------------------------------------------------
# Grouped expert kernel.  grid = (token_block, inter_tile)
#   token_block : "parallel"  — each block is one expert's packed tokens
#   inter_tile  : "arbitrary" — reduction over the intermediate dimension
# ---------------------------------------------------------------------------
def grouped_expert_kernel(block_expert_ref, block_rows_ref,
                          x_ref, w1_ref, w3_ref, w2_ref,
                          o_ref, acc_ref):
    b = pl.program_id(0)
    it = pl.program_id(1)

    @pl.when(it == 0)
    def _init():
        acc_ref[...] = jnp.zeros_like(acc_ref)

    # Skip MXU work for padding blocks (no routed rows).
    # TODO(synk): BlockSpec auto-pipelining still DMAs the weight tiles for
    # padding blocks; eliminating that requires manual (pl.ANY + make_async_copy)
    # weight double-buffering or a full gmm-style straddling-tile design.
    @pl.when(block_rows_ref[b] > 0)
    def _compute():
        x = x_ref[...]                                        # (TT, D) bf16
        # Contiguous, pre-transposed weight slabs: w1/w3 (D, I_t), w2 (I_t, D).
        h1 = jnp.dot(x, w1_ref[...], preferred_element_type=jnp.float32)
        h3 = jnp.dot(x, w3_ref[...], preferred_element_type=jnp.float32)
        inter = (h1 * jax.nn.sigmoid(h1)) * h3                # SiLU(w1 x) * (w3 x)
        acc_ref[...] += jnp.dot(inter.astype(x.dtype), w2_ref[...],
                                preferred_element_type=jnp.float32)

    # NOTE: the store is intentionally unconditional — padding blocks must write
    # zeros because their rows scatter-add into token 0 outside the kernel.
    @pl.when(it == pl.num_programs(1) - 1)
    def _finalize():
        o_ref[...] = acc_ref[...].astype(o_ref.dtype)


def grouped_expert_mix(x_sorted, block_expert, block_rows,
                       w1_t, w3_t, w2_t, *, vmem_cap):
    """x_sorted: (S_PAD, D) expert-grouped tokens.
    w1_t/w3_t: (Et, n_it, D, i_tile); w2_t: (Et, n_it, i_tile, D)."""
    s_pad, d = x_sorted.shape
    et, n_it, _, i_tile = w1_t.shape
    nb = block_expert.shape[0]
    tt = s_pad // nb
    inter = n_it * i_tile

    w_itemsize = jnp.dtype(w1_t.dtype).itemsize
    x_itemsize = jnp.dtype(x_sorted.dtype).itemsize
    est = _working_set_bytes(tt, d, i_tile, w_itemsize, x_itemsize)
    vmem_limit = int(min(int(0.9 * vmem_cap),
                         max(32 * 1024 * 1024, int(1.25 * est))))

    cost = pl.CostEstimate(
        flops=int(6 * s_pad * d * inter),
        transcendentals=int(s_pad * inter),
        bytes_accessed=int(2 * s_pad * d * x_itemsize
                           + nb * 3 * d * inter * w_itemsize),
    )

    # TODO(synk): fp8 expert-weight storage (scales folded into the external
    # scatter-add) would halve the binding HBM weight stream on v7x.
    # TODO(synk): interleave real/padding blocks so the two v7x TensorCores get
    # balanced work when trailing padding blocks exist.
    return pl.pallas_call(
        grouped_expert_kernel,
        out_shape=jax.ShapeDtypeStruct((s_pad, d), x_sorted.dtype),
        grid_spec=pltpu.PrefetchScalarGridSpec(
            num_scalar_prefetch=2,                 # block_expert, block_rows
            grid=(nb, n_it),
            in_specs=[
                pl.BlockSpec((tt, d), lambda b, it, be, br: (b, 0)),          # x block
                pl.BlockSpec((None, None, d, i_tile),
                             lambda b, it, be, br: (be[b], it, 0, 0)),        # w1[e,it]
                pl.BlockSpec((None, None, d, i_tile),
                             lambda b, it, be, br: (be[b], it, 0, 0)),        # w3[e,it]
                pl.BlockSpec((None, None, i_tile, d),
                             lambda b, it, be, br: (be[b], it, 0, 0)),        # w2[e,it]
            ],
            out_specs=pl.BlockSpec((tt, d), lambda b, it, be, br: (b, 0)),
            scratch_shapes=[pltpu.VMEM((tt, d), jnp.float32)],
        ),
        compiler_params=pltpu.CompilerParams(
            dimension_semantics=("parallel", "arbitrary"),
            vmem_limit_bytes=vmem_limit),
        cost_estimate=cost,
    )(block_expert, block_rows, x_sorted, w1_t, w3_t, w2_t)


# ---------------------------------------------------------------------------
# Parameter prep: fuse shared experts as extra pseudo-experts; pre-transpose to
# [in, out] and reshape to contiguous per-(expert, inner-tile) weight slabs.
# ---------------------------------------------------------------------------
def prepare_moe_params(params, *, max_token_tile=512, max_i_tile=512):
    w1, w2, w3 = params["w1"], params["w2"], params["w3"]     # (E,I,D),(E,D,I),(E,I,D)
    e, inter, d = w1.shape
    sw1, sw2, sw3 = params["sw1"], params["sw2"], params["sw3"]
    n_shared = sw1.shape[0] // inter
    # Split the shared MLP (inter = n_shared * I) into n_shared pseudo-experts.
    sw1_e = sw1.reshape(n_shared, inter, d)
    sw3_e = sw3.reshape(n_shared, inter, d)
    sw2_e = jnp.transpose(sw2.reshape(d, n_shared, inter), (1, 0, 2))
    w1_all = jnp.concatenate([w1, sw1_e], axis=0)             # (Et, I, D)
    w2_all = jnp.concatenate([w2, sw2_e], axis=0)             # (Et, D, I)
    w3_all = jnp.concatenate([w3, sw3_e], axis=0)             # (Et, I, D)
    et = e + n_shared

    w_itemsize = jnp.dtype(w1_all.dtype).itemsize
    _, i_tile, _ = _plan_tiles(d, inter, w_itemsize=w_itemsize, x_itemsize=2,
                               max_token_tile=max_token_tile, max_i_tile=max_i_tile)
    n_it = inter // i_tile

    # [in, out] layout + one contiguous (D, i_tile) / (i_tile, D) slab per
    # (expert, inner-tile) so each grid step's weight DMA is a single long copy.
    w1_t = jnp.swapaxes(w1_all, 1, 2).reshape(et, d, n_it, i_tile).transpose(0, 2, 1, 3)
    w3_t = jnp.swapaxes(w3_all, 1, 2).reshape(et, d, n_it, i_tile).transpose(0, 2, 1, 3)
    w2_t = jnp.swapaxes(w2_all, 1, 2).reshape(et, n_it, i_tile, d)

    # Only arrays in the prepared pytree (jit-friendly); tiling is re-derived
    # from static shapes inside moe_forward.
    return {"gate_w": params["gate_w"], "w1_t": w1_t, "w3_t": w3_t, "w2_t": w2_t}


# ---------------------------------------------------------------------------
# Forward
# ---------------------------------------------------------------------------
def moe_forward(x, prepared, *, topk, n_shared, route_scale=1.0,
                max_token_tile=512):
    gate_w = prepared["gate_w"]
    w1_t, w3_t, w2_t = prepared["w1_t"], prepared["w3_t"], prepared["w2_t"]
    et, n_it, d, i_tile = w1_t.shape
    inter = n_it * i_tile
    n_experts = et - n_shared

    orig_shape = x.shape
    x_tok = x.reshape(-1, d)
    t = x_tok.shape[0]

    # ---- Gate: tiny matmul + softmax + top-k, left to XLA (fused for free). ----
    # TODO(synk): softmax/top_k/argsort routing has no clean Pallas TPU primitive
    # that beats fused XLA at this size; only the expert MLP hot path is Pallas.
    scores = jnp.dot(x_tok, gate_w.T)                           # bf16, like F.linear
    probs = jax.nn.softmax(scores.astype(jnp.float32), axis=-1)
    top_vals, top_idx = lax.top_k(probs, topk)                  # (T, topk)
    weights = (top_vals * route_scale).astype(x.dtype)          # .type_as(x)

    # ---- Sparse assignment list: routed (top-k) + shared (weight 1.0). ----
    n_assign = t * (topk + n_shared)
    a_expert = jnp.concatenate([
        top_idx.reshape(-1).astype(jnp.int32),
        jnp.repeat(jnp.arange(n_experts, et, dtype=jnp.int32), t),
    ])
    a_tok = jnp.concatenate([
        jnp.repeat(jnp.arange(t, dtype=jnp.int32), topk),
        jnp.tile(jnp.arange(t, dtype=jnp.int32), n_shared),
    ])
    a_w = jnp.concatenate([
        weights.reshape(-1).astype(jnp.float32),
        jnp.ones((t * n_shared,), jnp.float32),
    ])

    # ---- Token tile: VMEM-aware max (arith intensity == tt), clamped by T. ----
    w_itemsize = jnp.dtype(w1_t.dtype).itemsize
    x_itemsize = jnp.dtype(x_tok.dtype).itemsize
    tt_max, _, vmem_cap = _plan_tiles(d, inter, w_itemsize=w_itemsize,
                                      x_itemsize=x_itemsize, i_tile=i_tile,
                                      max_token_tile=max_token_tile)
    tt = min(tt_max, _round_up(t, 8))

    # Static block bound: sum_e ceil(c_e/tt) <= ceil(T*topk/tt) + (#nz routed - 1),
    # plus exactly ceil(T/tt) per shared pseudo-expert.
    nb = (pl.cdiv(t * topk, tt) + max(min(n_experts, t * topk) - 1, 0)
          + n_shared * pl.cdiv(t, tt))
    s_pad = nb * tt

    # Stable sort required: unique dest rows rely on in-group ranks.
    order = jnp.argsort(a_expert, stable=True)
    s_expert = a_expert[order]
    s_tok = a_tok[order]
    s_w = a_w[order]

    counts = jnp.bincount(a_expert, length=et).astype(jnp.int32)
    grp_start = jnp.concatenate([jnp.zeros((1,), jnp.int32),
                                 jnp.cumsum(counts)[:-1].astype(jnp.int32)])
    blocks_pe = (counts + tt - 1) // tt
    cum_blocks = jnp.cumsum(blocks_pe)
    blk_start = jnp.concatenate([jnp.zeros((1,), cum_blocks.dtype),
                                 cum_blocks[:-1]])
    pad_off = blk_start * tt                                    # padded row offset / expert

    rank = jnp.arange(n_assign, dtype=jnp.int32) - grp_start[s_expert]
    dest = (pad_off[s_expert] + rank).astype(jnp.int32)         # unique rows in [0, s_pad)

    # TODO(synk): gather x rows inside the kernel (manual DMA gather from a
    # memory_space=pl.ANY input) instead of materializing x_sorted in HBM.
    x_sorted = jnp.zeros((s_pad, d), x_tok.dtype).at[dest].set(x_tok[s_tok])
    rw_pad = jnp.zeros((s_pad, 1), jnp.float32).at[dest].set(s_w[:, None])
    tok_pad = jnp.zeros((s_pad,), jnp.int32).at[dest].set(s_tok)

    blk_ids = jnp.arange(nb, dtype=cum_blocks.dtype)
    block_expert = jnp.minimum(
        jnp.searchsorted(cum_blocks, blk_ids, side="right"), et - 1
    ).astype(jnp.int32)
    rows_in_blk = jnp.clip(
        counts[block_expert] - (blk_ids - blk_start[block_expert]) * tt, 0, tt)
    block_rows = jnp.where(blk_ids < cum_blocks[-1], rows_in_blk, 0).astype(jnp.int32)

    # ---- Grouped expert MLP (routed + shared fused) in Pallas. ----
    out_sorted = grouped_expert_mix(x_sorted, block_expert, block_rows,
                                    w1_t, w3_t, w2_t, vmem_cap=vmem_cap)

    # ---- Routing weight + scatter-add back to token order (fp32). Padding rows
    # contribute exactly zero: zero input rows -> zero expert output, and rw=0.
    y = jnp.zeros((t, d), jnp.float32).at[tok_pad].add(
        out_sorted.astype(jnp.float32) * rw_pad)
    return y.astype(x.dtype).reshape(orig_shape)


# ---------------------------------------------------------------------------
# Pure-JAX fp32 reference (mirrors MoE.forward) for a self-check.
# ---------------------------------------------------------------------------
def moe_reference(x, params, *, topk, route_scale=1.0):
    gate_w = params["gate_w"]
    n_experts, d = gate_w.shape
    x_tok = x.reshape(-1, d)
    t = x_tok.shape[0]

    scores = jnp.dot(x_tok, gate_w.T)
    probs = jax.nn.softmax(scores.astype(jnp.float32), axis=-1)
    top_vals, top_idx = lax.top_k(probs, topk)
    rweights = (top_vals * route_scale).astype(x.dtype).astype(jnp.float32)

    xf = x_tok.astype(jnp.float32)
    w1 = params["w1"].astype(jnp.float32)
    w2 = params["w2"].astype(jnp.float32)
    w3 = params["w3"].astype(jnp.float32)
    rw_dense = jnp.zeros((t, n_experts), jnp.float32).at[
        jnp.arange(t)[:, None], top_idx].add(rweights)

    y = jnp.zeros_like(xf)
    for e in range(n_experts):
        h1 = xf @ w1[e].T
        h3 = xf @ w3[e].T
        y = y + rw_dense[:, e:e + 1] * ((h1 * jax.nn.sigmoid(h1) * h3) @ w2[e].T)

    sw1 = params["sw1"].astype(jnp.float32)
    sw2 = params["sw2"].astype(jnp.float32)
    sw3 = params["sw3"].astype(jnp.float32)
    h1 = xf @ sw1.T
    h3 = xf @ sw3.T
    z = (h1 * jax.nn.sigmoid(h1) * h3) @ sw2.T
    return (y + z).reshape(x.shape)


# ---------------------------------------------------------------------------
# Deterministic parameter init + demo
# ---------------------------------------------------------------------------
def init_params(key, *, dim, moe_inter, n_experts, n_shared):
    ks = jax.random.split(key, 7)
    s = 0.05
    shared_inter = n_shared * moe_inter
    return {
        "gate_w": (jax.random.normal(ks[0], (n_experts, dim)) * s).astype(jnp.bfloat16),
        "w1": (jax.random.normal(ks[1], (n_experts, moe_inter, dim)) * s).astype(jnp.bfloat16),
        "w2": (jax.random.normal(ks[2], (n_experts, dim, moe_inter)) * s).astype(jnp.bfloat16),
        "w3": (jax.random.normal(ks[3], (n_experts, moe_inter, dim)) * s).astype(jnp.bfloat16),
        "sw1": (jax.random.normal(ks[4], (shared_inter, dim)) * s).astype(jnp.bfloat16),
        "sw2": (jax.random.normal(ks[5], (dim, shared_inter)) * s).astype(jnp.bfloat16),
        "sw3": (jax.random.normal(ks[6], (shared_inter, dim)) * s).astype(jnp.bfloat16),
    }


if __name__ == "__main__":
    batch, seq = 2, 4
    dim = 32
    moe_inter_dim = 64
    n_routed_experts = 8
    n_activated_experts = 2
    n_shared_experts = 2

    key = jax.random.PRNGKey(0)
    pkey, xkey = jax.random.split(key)
    params = init_params(pkey, dim=dim, moe_inter=moe_inter_dim,
                         n_experts=n_routed_experts, n_shared=n_shared_experts)
    prepared = prepare_moe_params(params)
    x = jax.random.normal(xkey, (batch, seq, dim)).astype(jnp.bfloat16)

    fwd = jax.jit(functools.partial(moe_forward,
                                    topk=n_activated_experts,
                                    n_shared=n_shared_experts,
                                    route_scale=1.0))
    out = fwd(x, prepared)
    jax.block_until_ready(out)
    assert out.shape == x.shape and out.dtype == jnp.bfloat16

    ref = moe_reference(x, params, topk=n_activated_experts, route_scale=1.0)
    err = float(jnp.max(jnp.abs(out.astype(jnp.float32) - ref.astype(jnp.float32))))
    assert err < 3e-2, f"max abs err vs reference: {err}"
    print("KERNEL_OK")
</pallas_src>

<mosaic_0001>
module attributes {stable_mosaic.version = 11 : i64} {
  func.func private @main(%arg0: i32) attributes {dimension_semantics = [#tpu.dimension_semantics<core_parallel>], iteration_bounds = array<i64: 2>, tpu.core_type = #tpu.core_type<sc_scalar_subcore>, window_params = []} {
    return
  }
}

module attributes {stable_mosaic.version = 11 : i64} {
  func.func private @main(%arg0: i32) attributes {dimension_semantics = [#tpu.dimension_semantics<core_parallel>], iteration_bounds = array<i64: 2>, tpu.core_type = #tpu.core_type<sc_scalar_subcore>, window_params = []} {
    return
  }
}

module attributes {stable_mosaic.version = 11 : i64} {
  func.func @grouped_expert_kernel(%arg0: i32, %arg1: i32, %arg2: memref<11xi32, #tpu.memory_space<smem>>, %arg3: memref<11xi32, #tpu.memory_space<smem>>, %arg4: memref<8x32xbf16, #tpu.memory_space<vmem>>, %arg5: memref<1x1x32x64xbf16, #tpu.memory_space<vmem>>, %arg6: memref<1x1x32x64xbf16, #tpu.memory_space<vmem>>, %arg7: memref<1x1x64x32xbf16, #tpu.memory_space<vmem>>, %arg8: memref<8x32xbf16, #tpu.memory_space<vmem>>, %arg9: memref<8x32xf32, #tpu.memory_space<vmem>>) attributes {dimension_semantics = [#tpu.dimension_semantics<parallel>, #tpu.dimension_semantics<arbitrary>], iteration_bounds = array<i64: 11, 1>, scalar_prefetch = 2 : i64, scratch_operands = 1 : i64, tpu.core_type = #tpu.core_type<tc>, window_params = [{transform_indices = @transform_0, window_bounds = array<i64: 8, 32>}, {transform_indices = @transform_1, window_bounds = array<i64: 1, 1, 32, 64>}, {transform_indices = @transform_2, window_bounds = array<i64: 1, 1, 32, 64>}, {transform_indices = @transform_3, window_bounds = array<i64: 1, 1, 64, 32>}, {transform_indices = @transform_4, window_bounds = array<i64: 8, 32>}]} {
    %c0_i32 = arith.constant 0 : i32
    %0 = arith.cmpi eq, %arg1, %c0_i32 : i32
    %1 = arith.extui %0 : i1 to i32
    %c0_i32_0 = arith.constant 0 : i32
    %2 = arith.cmpi ne, %1, %c0_i32_0 : i32
    scf.if %2 {
      %cst = arith.constant 0.000000e+00 : f32
      %11 = vector.broadcast %cst : f32 to vector<8x32xf32>
      %c0 = arith.constant 0 : index
      %c0_5 = arith.constant 0 : index
      %12 = vector.load %arg9[%c0, %c0_5] : memref<8x32xf32, #tpu.memory_space<vmem>>, vector<8x32xf32>
      tpu.vector_store %arg9[%c0, %c0_5], %11 {strides = array<i32>} : memref<8x32xf32, #tpu.memory_space<vmem>>, vector<8x32xf32>,
    } else {
    }
    %3 = arith.index_cast %arg0 : i32 to index
    %4 = memref.load %arg3[%3] : memref<11xi32, #tpu.memory_space<smem>>
    %c0_i32_1 = arith.constant 0 : i32
    %5 = arith.cmpi sgt, %4, %c0_i32_1 : i32
    %6 = arith.extui %5 : i1 to i32
    %c0_i32_2 = arith.constant 0 : i32
    %7 = arith.cmpi ne, %6, %c0_i32_2 : i32
    scf.if %7 {
      %c0 = arith.constant 0 : index
      %c0_5 = arith.constant 0 : index
      %11 = vector.load %arg4[%c0, %c0_5] : memref<8x32xbf16, #tpu.memory_space<vmem>>, vector<8x32xbf16>
      %c0_6 = arith.constant 0 : index
      %c0_7 = arith.constant 0 : index
      %c0_8 = arith.constant 0 : index
      %c0_9 = arith.constant 0 : index
      %12 = vector.load %arg5[%c0_6, %c0_7, %c0_8, %c0_9] : memref<1x1x32x64xbf16, #tpu.memory_space<vmem>>, vector<1x1x32x64xbf16>
      %13 = vector.shape_cast %12 : vector<1x1x32x64xbf16> to vector<32x64xbf16>
      %cst = arith.constant dense<0.000000e+00> : vector<8x64xf32>
      %14 = tpu.matmul %11, %13, %cst {dimension_numbers = #tpu.dot_dimension_numbers<[1], [0], [0], [1], [0, 0, 1, 1], [], []>} : vector<8x32xbf16>, vector<32x64xbf16>, vector<8x64xf32> -> vector<8x64xf32>
      %c0_10 = arith.constant 0 : index
      %c0_11 = arith.constant 0 : index
      %c0_12 = arith.constant 0 : index
      %c0_13 = arith.constant 0 : index
      %15 = vector.load %arg6[%c0_10, %c0_11, %c0_12, %c0_13] : memref<1x1x32x64xbf16, #tpu.memory_space<vmem>>, vector<1x1x32x64xbf16>
      %16 = vector.shape_cast %15 : vector<1x1x32x64xbf16> to vector<32x64xbf16>
      %cst_14 = arith.constant dense<0.000000e+00> : vector<8x64xf32>
      %17 = tpu.matmul %11, %16, %cst_14 {dimension_numbers = #tpu.dot_dimension_numbers<[1], [0], [0], [1], [0, 0, 1, 1], [], []>} : vector<8x32xbf16>, vector<32x64xbf16>, vector<8x64xf32> -> vector<8x64xf32>
      %18 = arith.negf %14 : vector<8x64xf32>
      %19 = math.exp %18 : vector<8x64xf32>
      %cst_15 = arith.constant 1.000000e+00 : f32
      %20 = vector.broadcast %cst_15 : f32 to vector<8x64xf32>
      %21 = arith.addf %20, %19 : vector<8x64xf32>
      %22 = arith.divf %20, %21 : vector<8x64xf32>
      %23 = arith.mulf %14, %22 : vector<8x64xf32>
      %24 = arith.mulf %23, %17 : vector<8x64xf32>
      %c0_16 = arith.constant 0 : index
      %c0_17 = arith.constant 0 : index
      %25 = vector.load %arg9[%c0_16, %c0_17] : memref<8x32xf32, #tpu.memory_space<vmem>>, vector<8x32xf32>
      %26 = arith.truncf %24 : vector<8x64xf32> to vector<8x64xbf16>
      %c0_18 = arith.constant 0 : index
      %c0_19 = arith.constant 0 : index
      %c0_20 = arith.constant 0 : index
      %c0_21 = arith.constant 0 : index
      %27 = vector.load %arg7[%c0_18, %c0_19, %c0_20, %c0_21] : memref<1x1x64x32xbf16, #tpu.memory_space<vmem>>, vector<1x1x64x32xbf16>
      %28 = vector.shape_cast %27 : vector<1x1x64x32xbf16> to vector<64x32xbf16>
      %cst_22 = arith.constant dense<0.000000e+00> : vector<8x32xf32>
      %29 = tpu.matmul %26, %28, %cst_22 {dimension_numbers = #tpu.dot_dimension_numbers<[1], [0], [0], [1], [0, 0, 1, 1], [], []>} : vector<8x64xbf16>, vector<64x32xbf16>, vector<8x32xf32> -> vector<8x32xf32>
      %30 = arith.addf %25, %29 : vector<8x32xf32>
      %c0_23 = arith.constant 0 : index
      %c0_24 = arith.constant 0 : index
      %31 = vector.load %arg9[%c0_23, %c0_24] : memref<8x32xf32, #tpu.memory_space<vmem>>, vector<8x32xf32>
      tpu.vector_store %arg9[%c0_23, %c0_24], %30 {strides = array<i32>} : memref<8x32xf32, #tpu.memory_space<vmem>>, vector<8x32xf32>,
    } else {
    }
    %c0_i32_3 = arith.constant 0 : i32
    %8 = arith.cmpi eq, %arg1, %c0_i32_3 : i32
    %9 = arith.extui %8 : i1 to i32
    %c0_i32_4 = arith.constant 0 : i32
    %10 = arith.cmpi ne, %9, %c0_i32_4 : i32
    scf.if %10 {
      %c0 = arith.constant 0 : index
      %c0_5 = arith.constant 0 : index
      %11 = vector.load %arg9[%c0, %c0_5] : memref<8x32xf32, #tpu.memory_space<vmem>>, vector<8x32xf32>
      %12 = arith.truncf %11 : vector<8x32xf32> to vector<8x32xbf16>
      %c0_6 = arith.constant 0 : index
      %c0_7 = arith.constant 0 : index
      %13 = vector.load %arg8[%c0_6, %c0_7] : memref<8x32xbf16, #tpu.memory_space<vmem>>, vector<8x32xbf16>
      tpu.vector_store %arg8[%c0_6, %c0_7], %12 {strides = array<i32>} : memref<8x32xbf16, #tpu.memory_space<vmem>>, vector<8x32xbf16>,
    } else {
    }
    return
  }
  func.func @transform_0(%arg0: i32, %arg1: i32, %arg2: memref<11xi32, #tpu.memory_space<smem>>, %arg3: memref<11xi32, #tpu.memory_space<smem>>) -> (i32, i32) {
    %c0_i32 = arith.constant 0 : i32
    %c0_i32_0 = arith.constant 0 : i32
    return %arg0, %c0_i32 : i32, i32
  }
  func.func @transform_1(%arg0: i32, %arg1: i32, %arg2: memref<11xi32, #tpu.memory_space<smem>>, %arg3: memref<11xi32, #tpu.memory_space<smem>>) -> (i32, i32, i32, i32) {
    %0 = arith.index_cast %arg0 : i32 to index
    %1 = memref.load %arg2[%0] : memref<11xi32, #tpu.memory_space<smem>>
    %c0_i32 = arith.constant 0 : i32
    %c0_i32_0 = arith.constant 0 : i32
    %c0_i32_1 = arith.constant 0 : i32
    return %1, %arg1, %c0_i32, %c0_i32_0 : i32, i32, i32, i32
  }
  func.func @transform_2(%arg0: i32, %arg1: i32, %arg2: memref<11xi32, #tpu.memory_space<smem>>, %arg3: memref<11xi32, #tpu.memory_space<smem>>) -> (i32, i32, i32, i32) {
    %0 = arith.index_cast %arg0 : i32 to index
    %1 = memref.load %arg2[%0] : memref<11xi32, #tpu.memory_space<smem>>
    %c0_i32 = arith.constant 0 : i32
    %c0_i32_0 = arith.constant 0 : i32
    %c0_i32_1 = arith.constant 0 : i32
    return %1, %arg1, %c0_i32, %c0_i32_0 : i32, i32, i32, i32
  }
  func.func @transform_3(%arg0: i32, %arg1: i32, %arg2: memref<11xi32, #tpu.memory_space<smem>>, %arg3: memref<11xi32, #tpu.memory_space<smem>>) -> (i32, i32, i32, i32) {
    %0 = arith.index_cast %arg0 : i32 to index
    %1 = memref.load %arg2[%0] : memref<11xi32, #tpu.memory_space<smem>>
    %c0_i32 = arith.constant 0 : i32
    %c0_i32_0 = arith.constant 0 : i32
    %c0_i32_1 = arith.constant 0 : i32
    return %1, %arg1, %c0_i32, %c0_i32_0 : i32, i32, i32, i32
  }
  func.func @transform_4(%arg0: i32, %arg1: i32, %arg2: memref<11xi32, #tpu.memory_space<smem>>, %arg3: memref<11xi32, #tpu.memory_space<smem>>) -> (i32, i32) {
    %c0_i32 = arith.constant 0 : i32
    %c0_i32_0 = arith.constant 0 : i32
    return %arg0, %c0_i32 : i32, i32
  }
}

</mosaic_0001>

<llo_original>
// kernel: custom-call.1
$region0: #{custom-call.1}
  %s0 = inlined_call_operand.vmem [shape: u32[11], index: 0, kind: output, shape index: {}]

// kernel: moe_forward.1
$region0: #{moe_forward.1}
  #allocation0 [shape = 'u32[]', space=smem, size = 0x4, offset = 0x4, fixed_abs, tag = 'smem constant byte address 0x4 - core index']
  #allocation1 [shape = 'u32[144,128]{1,0:T(1,128)}', space=vmem, size = 0x12000, scoped, tag = 'internal scratch']
  #allocation2 [shape = 'f32[8,32]{1,0:T(8,128)}', space=vmem, size = 0x1000, scoped, tag = 'scratch operand']
  #allocation3 [shape = 's32[1]{0}', space=sflag, size = 0x4, scoped, tag = 'scoped memory for moe_forward.1']
  #allocation4 [shape = 'u8[512]{0}', space=smem, size = 0x200, scoped, tag = 'prefetched SMEM operand 0']
  #allocation5 [shape = 'u8[512]{0}', space=smem, size = 0x200, scoped, tag = 'prefetched SMEM operand 1']
  %s0 = inlined_call_operand.vmem [shape: s32[11], index: 0, kind: input, shape index: {}]
  %s1 = inlined_call_operand.vmem [shape: s32[11], index: 1, kind: input, shape index: {}]
  %s2 = inlined_call_operand.vmem [shape: bf16[88,32], index: 2, kind: input, shape index: {}]
  %s3 = inlined_call_operand.vmem [shape: bf16[10,1,32,64], index: 3, kind: input, shape index: {}]
  %s4 = inlined_call_operand.vmem [shape: bf16[10,1,32,64], index: 4, kind: input, shape index: {}]
  %s5 = inlined_call_operand.vmem [shape: bf16[10,1,64,32], index: 5, kind: input, shape index: {}]
  %s6 = inlined_call_operand.vmem [shape: bf16[88,32], index: 6, kind: output, shape index: {}]
  %s7 = sld [smem:[#allocation0]]
  $region61: #{moe_forward.1} parent=0
    _
  %s9 = ssub.s32 1, %s7
  %s10 = scalar_select 0, %s9, %s7
  %s11 = sshll.u32 %s0, 4
  %s12 = int_to_ptr.vmem [resolvable:$true] %s11
  %14 = dma.vmem_to_smem %s12, 16, [#allocation4], [#allocation3]
  %s15 = sshll.u32 %s1, 4
  %s16 = int_to_ptr.vmem [resolvable:$true] %s15
  %18 = dma.vmem_to_smem %s16, 16, [#allocation5], [#allocation3]
  %19 = dma.done [#allocation3], 32
  %20 = sfence
  loop: start=0, step=1, limit=13
  $region2: #{moe_forward.1} parent=0 // loop_pre_header
    _
  $region3: #{moe_forward.1} parent=0 // loop_header
    %s22 = sphi 0, %s26
    %p23 = scmp.ge.s32.totalorder %s22, 13
    %s29 = sphi 0, %s41
    %s30 = sphi 0, %s37
    %s31 = sphi 0, %s29
    %s32 = sphi 0, %s30
    %s33 = sphi 0, %s31
    %s34 = sphi 0, %s32
    %s44 = sphi 0, %s46
    %s47 = sphi 0, %s44
    %s48 = sphi 0, %s47
    %s64 = sphi 0, %s48
    %s74 = sphi 0, %s76
    %s77 = sphi 0, %s74
    %s78 = sphi 0, %s77
    %s94 = sphi 0, %s78
    %s104 = sphi 0, %s106
    %s107 = sphi 0, %s104
    %s108 = sphi 0, %s107
    %s124 = sphi 0, %s108
    %s134 = sphi 0, %s136
    %s137 = sphi 0, %s134
    %s138 = sphi 0, %s137
    %s154 = sphi 0, %s138
    %s160 = sphi 0, %s162
    %s163 = sphi 0, %s160
    %s164 = sphi 0, %s163
    %s180 = sphi 0, %s164
  $region4: #{moe_forward.1} parent=0 // loop_header_branch
    %25 = sbr.rel (%p23) target = $region8
  $region5: #{moe_forward.1} parent=0 // loop_body
    %s27 = ssub.s32 %s22, 1
    %s28 = ssub.s32 %s22, 2
    %s35 = sadd.s32 1, %s30
    %p36 = scmp.ge.s32.totalorder %s35, 1
    %s37 = scalar_select %p36, 0, %s35
    %s38 = sadd.s32 1, %s29
    %s39 = scalar_select %p36, %s38, %s29
    %p40 = scmp.ge.s32.totalorder %s39, 11
    %s41 = scalar_select %p40, 0, %s39
    %s42 = ssub.s32 %s29, %s41
    %p43 = scmp.eq.s32.totalorder %s42, 0
    %s45 = sadd.s32 %s44, 1
    %s46 = scalar_select %p43, %s44, %s45
    %p49 = pneg %p43
    %p50 = scmp.eq.s32.totalorder %s22, 10
    %p51 = por %p49, %p50
    %p52 = scmp.ne.s32.totalorder %s44, %s47
    %p53 = scmp.eq.s32.totalorder %s22, 0
    %p54 = por %p52, %p53
    %p55 = scmp.ne.s32.totalorder %s44, %s47
    %p56 = scmp.eq.s32.totalorder %s27, 10
    %p57 = por %p55, %p56
    %p58 = scmp.ne.s32.totalorder %s47, %s48
    %p59 = scmp.eq.s32.totalorder %s27, 0
    %p60 = por %p58, %p59
    %p61 = scmp.ne.s32.totalorder %s47, %s48
    %p62 = scmp.eq.s32.totalorder %s28, 10
    %p63 = por %p61, %p62
    %p65 = scmp.ne.s32.totalorder %s48, %s64
    %p66 = scmp.eq.s32.totalorder %s28, 0
    %p67 = por %p65, %p66
    %s68 = sld [smem:[#allocation4 + %s29]]
    %s69 = sld [smem:[#allocation4 + %s41]]
    %s70 = ssub.s32 %s68, %s69
    %s71 = ssub.s32 %s30, %s37
    %s72 = sor.u32 %s70, %s71
    %p73 = scmp.eq.s32.totalorder %s72, 0
    %s75 = sadd.s32 %s74, 1
    %s76 = scalar_select %p73, %s74, %s75
    %p79 = pneg %p73
    %p80 = scmp.eq.s32.totalorder %s22, 10
    %p81 = por %p79, %p80
    %p82 = scmp.ne.s32.totalorder %s74, %s77
    %p83 = scmp.eq.s32.totalorder %s22, 0
    %p84 = por %p82, %p83
    %p85 = scmp.ne.s32.totalorder %s74, %s77
    %p86 = scmp.eq.s32.totalorder %s27, 10
    %p87 = por %p85, %p86
    %p88 = scmp.ne.s32.totalorder %s77, %s78
    %p89 = scmp.eq.s32.totalorder %s27, 0
    %p90 = por %p88, %p89
    %p91 = scmp.ne.s32.totalorder %s77, %s78
    %p92 = scmp.eq.s32.totalorder %s28, 10
    %p93 = por %p91, %p92
    %p95 = scmp.ne.s32.totalorder %s78, %s94
    %p96 = scmp.eq.s32.totalorder %s28, 0
    %p97 = por %p95, %p96
    %s98 = sld [smem:[#allocation4 + %s29]]
    %s99 = sld [smem:[#allocation4 + %s41]]
    %s100 = ssub.s32 %s98, %s99
    %s101 = ssub.s32 %s30, %s37
    %s102 = sor.u32 %s100, %s101
    %p103 = scmp.eq.s32.totalorder %s102, 0
    %s105 = sadd.s32 %s104, 1
    %s106 = scalar_select %p103, %s104, %s105
    %p109 = pneg %p103
    %p110 = scmp.eq.s32.totalorder %s22, 10
    %p111 = por %p109, %p110
    %p112 = scmp.ne.s32.totalorder %s104, %s107
    %p113 = scmp.eq.s32.totalorder %s22, 0
    %p114 = por %p112, %p113
    %p115 = scmp.ne.s32.totalorder %s104, %s107
    %p116 = scmp.eq.s32.totalorder %s27, 10
    %p117 = por %p115, %p116
    %p118 = scmp.ne.s32.totalorder %s107, %s108
    %p119 = scmp.eq.s32.totalorder %s27, 0
    %p120 = por %p118, %p119
    %p121 = scmp.ne.s32.totalorder %s107, %s108
    %p122 = scmp.eq.s32.totalorder %s28, 10
    %p123 = por %p121, %p122
    %p125 = scmp.ne.s32.totalorder %s108, %s124
    %p126 = scmp.eq.s32.totalorder %s28, 0
    %p127 = por %p125, %p126
    %s128 = sld [smem:[#allocation4 + %s29]]
    %s129 = sld [smem:[#allocation4 + %s41]]
    %s130 = ssub.s32 %s128, %s129
    %s131 = ssub.s32 %s30, %s37
    %s132 = sor.u32 %s130, %s131
    %p133 = scmp.eq.s32.totalorder %s132, 0
    %s135 = sadd.s32 %s134, 1
    %s136 = scalar_select %p133, %s134, %s135
    %p139 = pneg %p133
    %p140 = scmp.eq.s32.totalorder %s22, 10
    %p141 = por %p139, %p140
    %p142 = scmp.ne.s32.totalorder %s134, %s137
    %p143 = scmp.eq.s32.totalorder %s22, 0
    %p144 = por %p142, %p143
    %p145 = scmp.ne.s32.totalorder %s134, %s137
    %p146 = scmp.eq.s32.totalorder %s27, 10
    %p147 = por %p145, %p146
    %p148 = scmp.ne.s32.totalorder %s137, %s138
    %p149 = scmp.eq.s32.totalorder %s27, 0
    %p150 = por %p148, %p149
    %p151 = scmp.ne.s32.totalorder %s137, %s138
    %p152 = scmp.eq.s32.totalorder %s28, 10
    %p153 = por %p151, %p152
    %p155 = scmp.ne.s32.totalorder %s138, %s154
    %p156 = scmp.eq.s32.totalorder %s28, 0
    %p157 = por %p155, %p156
    %s158 = ssub.s32 %s29, %s41
    %p159 = scmp.eq.s32.totalorder %s158, 0
    %s161 = sadd.s32 %s160, 1
    %s162 = scalar_select %p159, %s160, %s161
    %p165 = pneg %p159
    %p166 = scmp.eq.s32.totalorder %s22, 10
    %p167 = por %p165, %p166
    %p168 = scmp.ne.s32.totalorder %s160, %s163
    %p169 = scmp.eq.s32.totalorder %s22, 0
    %p170 = por %p168, %p169
    %p171 = scmp.ne.s32.totalorder %s160, %s163
    %p172 = scmp.eq.s32.totalorder %s27, 10
    %p173 = por %p171, %p172
    %p174 = scmp.ne.s32.totalorder %s163, %s164
    %p175 = scmp.eq.s32.totalorder %s27, 0
    %p176 = por %p174, %p175
    %p177 = scmp.ne.s32.totalorder %s163, %s164
    %p178 = scmp.eq.s32.totalorder %s28, 10
    %p179 = por %p177, %p178
    %p181 = scmp.ne.s32.totalorder %s164, %s180
    %p182 = scmp.eq.s32.totalorder %s28, 0
    %p183 = por %p181, %p182
    %p184 = scmp.le.s32.totalorder 1, %s22
    %p185 = scmp.lt.s32.totalorder %s22, 12
    %p186 = pnand %p184, %p185
    %p187 = pneg %p186
    // Predicated region
    $region9: #{moe_forward.1} parent=5 // pred_check
      _
    $region10: #{moe_forward.1} parent=5 // pred_check_branch
      %189 = sbr.rel (%p186) target = $region12
    $region11: #{moe_forward.1} parent=5 // pred_region
      %s190 = ssub.s32 %s22, 1
    $region12: #{moe_forward.1} parent=5 // pred_fallthru
      _
    %p191 = scmp.lt.s32.totalorder %s22, 11
    // Predicated region
    $region13: #{moe_forward.1} parent=5 // pred_check
      %p192 = pneg %p191
    $region14: #{moe_forward.1} parent=5 // pred_check_branch
      %194 = sbr.rel (%p192) target = $region16
    $region15: #{moe_forward.1} parent=5 // pred_region
      // Predicated region
      $region17: #{moe_forward.1} parent=15 // pred_check
        %p195 = pneg %p54
      $region18: #{moe_forward.1} parent=15 // pred_check_branch
        %197 = sbr.rel (%p195) target = $region20
      $region19: #{moe_forward.1} parent=15 // pred_region
        %p198 = scmp.lt.s32.totalorder %s29, 10
        %s199 = scalar_select %p198, %s29, 10
        %s200 = smul.addr %s199, 4
        %s201 = scalar_lea.vmem %s2, %s200
      $region20: #{moe_forward.1} parent=15 // pred_fallthru
        _
      // Predicated region
      $region21: #{moe_forward.1} parent=15 // pred_check
        %p202 = pneg %p84
      $region22: #{moe_forward.1} parent=15 // pred_check_branch
        %204 = sbr.rel (%p202) target = $region24
      $region23: #{moe_forward.1} parent=15 // pred_region
        %s205 = sld [smem:[#allocation4 + %s29]]
        %p206 = scmp.lt.s32.totalorder %s205, 9
        %s207 = scalar_select %p206, %s205, 9
        %p208 = scmp.lt.s32.totalorder %s30, 0
        %s209 = scalar_select %p208, %s30, 0
        %s210 = smul.addr %s209, 4
        %s211 = smul.addr %s207, 4
        %s212 = sadd.s32 %s210, %s211
        %s213 = smul.addr %s212, 4
        %s214 = scalar_lea.vmem %s3, %s213
        %s215 = sld [smem:[#allocation4 + %s29]]
      $region24: #{moe_forward.1} parent=15 // pred_fallthru
        _
      // Predicated region
      $region25: #{moe_forward.1} parent=15 // pred_check
        %p216 = pneg %p114
      $region26: #{moe_forward.1} parent=15 // pred_check_branch
        %218 = sbr.rel (%p216) target = $region28
      $region27: #{moe_forward.1} parent=15 // pred_region
        %s219 = sld [smem:[#allocation4 + %s29]]
        %p220 = scmp.lt.s32.totalorder %s219, 9
        %s221 = scalar_select %p220, %s219, 9
        %p222 = scmp.lt.s32.totalorder %s30, 0
        %s223 = scalar_select %p222, %s30, 0
        %s224 = smul.addr %s223, 4
        %s225 = smul.addr %s221, 4
        %s226 = sadd.s32 %s224, %s225
        %s227 = smul.addr %s226, 4
        %s228 = scalar_lea.vmem %s4, %s227
        %s229 = sld [smem:[#allocation4 + %s29]]
      $region28: #{moe_forward.1} parent=15 // pred_fallthru
        _
      // Predicated region
      $region29: #{moe_forward.1} parent=15 // pred_check
        %p230 = pneg %p144
      $region30: #{moe_forward.1} parent=15 // pred_check_branch
        %232 = sbr.rel (%p230) target = $region32
      $region31: #{moe_forward.1} parent=15 // pred_region
        %s233 = sld [smem:[#allocation4 + %s29]]
        %p234 = scmp.lt.s32.totalorder %s233, 9
        %s235 = scalar_select %p234, %s233, 9
        %p236 = scmp.lt.s32.totalorder %s30, 0
        %s237 = scalar_select %p236, %s30, 0
        %s238 = smul.addr %s237, 8
        %s239 = smul.addr %s235, 8
        %s240 = sadd.s32 %s238, %s239
        %s241 = smul.addr %s240, 4
        %s242 = scalar_lea.vmem %s5, %s241
        %s243 = sld [smem:[#allocation4 + %s29]]
      $region32: #{moe_forward.1} parent=15 // pred_fallthru
        _
    $region16: #{moe_forward.1} parent=5 // pred_fallthru
      _
    %p244 = scmp.le.s32.totalorder 1, %s22
    %p245 = scmp.lt.s32.totalorder %s22, 12
    %p246 = pnand %p244, %p245
    %p247 = pneg %p246
    // Predicated region
    $region33: #{moe_forward.1} parent=5 // pred_check
      _
    $region34: #{moe_forward.1} parent=5 // pred_check_branch
      %249 = sbr.rel (%p246) target = $region36
    $region35: #{moe_forward.1} parent=5 // pred_region
      %s250 = ssub.s32 %s22, 1
      %p251 = scmp.lt.s32.totalorder %s31, 10
      %s252 = scalar_select %p251, %s31, 10
      %s253 = smul.addr %s252, 4
      %s254 = scalar_lea.vmem %s2, %s253
      %p255 = pneg %p60
      %p256 = pneg %p57
      %s257 = sld [smem:[#allocation4 + %s31]]
      %p258 = scmp.lt.s32.totalorder %s257, 9
      %s259 = scalar_select %p258, %s257, 9
      %p260 = scmp.lt.s32.totalorder %s32, 0
      %s261 = scalar_select %p260, %s32, 0
      %s262 = smul.addr %s261, 4
      %s263 = smul.addr %s259, 4
      %s264 = sadd.s32 %s262, %s263
      %s265 = smul.addr %s264, 4
      %s266 = scalar_lea.vmem %s3, %s265
      %p267 = pneg %p90
      %p268 = pneg %p87
      %s269 = sld [smem:[#allocation4 + %s31]]
      %p270 = scmp.lt.s32.totalorder %s269, 9
      %s271 = scalar_select %p270, %s269, 9
      %p272 = scmp.lt.s32.totalorder %s32, 0
      %s273 = scalar_select %p272, %s32, 0
      %s274 = smul.addr %s273, 4
      %s275 = smul.addr %s271, 4
      %s276 = sadd.s32 %s274, %s275
      %s277 = smul.addr %s276, 4
      %s278 = scalar_lea.vmem %s4, %s277
      %p279 = pneg %p120
      %p280 = pneg %p117
      %s281 = sld [smem:[#allocation4 + %s31]]
      %p282 = scmp.lt.s32.totalorder %s281, 9
      %s283 = scalar_select %p282, %s281, 9
      %p284 = scmp.lt.s32.totalorder %s32, 0
      %s285 = scalar_select %p284, %s32, 0
      %s286 = smul.addr %s285, 8
      %s287 = smul.addr %s283, 8
      %s288 = sadd.s32 %s286, %s287
      %s289 = smul.addr %s288, 4
      %s290 = scalar_lea.vmem %s5, %s289
      %p291 = pneg %p150
      %p292 = pneg %p147
      %p293 = pneg %p176
      %p294 = pneg %p173
      %p295 = scmp.lt.s32.totalorder %s31, 10
      %s296 = scalar_select %p295, %s31, 10
      %s297 = smul.addr %s296, 4
      %s298 = scalar_lea.vmem %s6, %s297
      %p299 = scmp.lt.s32.totalorder %s31, 10
      %s300 = scalar_select %p299, %s31, 10
      %s301 = smul.addr %s300, 4
      %s302 = scalar_lea.vmem %s2, %s301
      %s303 = sld [smem:[#allocation4 + %s31]]
      %p304 = scmp.lt.s32.totalorder %s303, 9
      %s305 = scalar_select %p304, %s303, 9
      %p306 = scmp.lt.s32.totalorder %s32, 0
      %s307 = scalar_select %p306, %s32, 0
      %s308 = smul.addr %s307, 4
      %s309 = smul.addr %s305, 4
      %s310 = sadd.s32 %s308, %s309
      %s311 = smul.addr %s310, 4
      %s312 = scalar_lea.vmem %s3, %s311
      %s313 = sld [smem:[#allocation4 + %s31]]
      %s314 = sld [smem:[#allocation4 + %s31]]
      %p315 = scmp.lt.s32.totalorder %s314, 9
      %s316 = scalar_select %p315, %s314, 9
      %p317 = scmp.lt.s32.totalorder %s32, 0
      %s318 = scalar_select %p317, %s32, 0
      %s319 = smul.addr %s318, 4
      %s320 = smul.addr %s316, 4
      %s321 = sadd.s32 %s319, %s320
      %s322 = smul.addr %s321, 4
      %s323 = scalar_lea.vmem %s4, %s322
      %s324 = sld [smem:[#allocation4 + %s31]]
      %s325 = sld [smem:[#allocation4 + %s31]]
      %p326 = scmp.lt.s32.totalorder %s325, 9
      %s327 = scalar_select %p326, %s325, 9
      %p328 = scmp.lt.s32.totalorder %s32, 0
      %s329 = scalar_select %p328, %s32, 0
      %s330 = smul.addr %s329, 8
      %s331 = smul.addr %s327, 8
      %s332 = sadd.s32 %s330, %s331
      %s333 = smul.addr %s332, 4
      %s334 = scalar_lea.vmem %s5, %s333
      %s335 = sld [smem:[#allocation4 + %s31]]
      %p336 = scmp.lt.s32.totalorder %s31, 10
      %s337 = scalar_select %p336, %s31, 10
      %s338 = smul.addr %s337, 4
      %s339 = scalar_lea.vmem %s6, %s338
      %p341 = scmp.eq.s32.totalorder %s32, 0
      // Predicated region
      $region37: #{moe_forward.1} parent=35 // pred_check
        %p342 = pneg %p341
      $region38: #{moe_forward.1} parent=35 // pred_check_branch
        %344 = sbr.rel (%p342) target = $region40
      $region39: #{moe_forward.1} parent=35 // pred_region
        %vm345 = vcmask 261120
        %346 = vst.msk [vmem:[#allocation2] sm:$0xff] %vm345, 0.0
      $region40: #{moe_forward.1} parent=35 // pred_fallthru
        _
      %s347 = sld [smem:[#allocation5 + %s31]]
      %p348 = scmp.gt.s32.totalorder %s347, 0
      // Predicated region
      $region41: #{moe_forward.1} parent=35 // pred_check
        %p349 = pneg %p348
      $region42: #{moe_forward.1} parent=35 // pred_check_branch
        %351 = sbr.rel (%p349) target = $region44
      $region43: #{moe_forward.1} parent=35 // pred_region
        %v352 = vld [vmem:[%s302] sm:$0xf]
        %v353 = vld [vmem:[%s312] sm:$0xf]
        %v354 = vld [vmem:[%s312 + $0x4] sm:$0xf]
        %v355 = vld [vmem:[%s312 + $0x8] sm:$0xf]
        %v356 = vld [vmem:[%s312 + $0xc] sm:$0xf]
        %v361 = vunpack.c.l.b16 %v353
        %v362 = vunpack.c.l.b16 %v354
        %v363 = vunpack.c.l.b16 %v355
        %v364 = vunpack.c.l.b16 %v356
        %v365 = vpack.c.b16 %v362, %v361
        %v366 = vpack.c.b16 %v364, %v363
        %vm369 = vcmask 261120
        %v371 = vsel %vm369, %v352, 0
        %373 = vmatprep.subr.bf16.mxu0 0
        %374 = vmatpush1.bf16.msra.mxu0 %v365
        %375 = vmatprep.subr.bf16.mxu0 0
        %376 = vmatpush1.bf16.msra.mxu0 %v366
        %377 = vmatprep.subr.bf16.mxu0 0
        %378 = vmatpush1.bf16.msra.mxu0 0
        %379 = vmatprep.subr.bf16.mxu0 0
        %380 = vmatpush1.bf16.msra.mxu0 0
        %381 = vmatprep.subr.bf16.mxu0 0
        %382 = vmatpush1.bf16.msra.mxu0 0
        %383 = vmatprep.subr.bf16.mxu0 0
        %384 = vmatpush1.bf16.msra.mxu0 0
        %385 = vmatprep.subr.bf16.mxu0 0
        %386 = vmatpush1.bf16.msra.mxu0 0
        %387 = vmatprep.subr.bf16.mxu0 0
        %388 = vmatpush1.bf16.msra.mxu0 0
        %389 = vmatprep.subr.bf16.mxu0 0
        %390 = vmatpush1.bf16.msra.mxu0 0
        %391 = vmatprep.subr.bf16.mxu0 0
        %392 = vmatpush1.bf16.msra.mxu0 0
        %393 = vmatprep.subr.bf16.mxu0 0
        %394 = vmatpush1.bf16.msra.mxu0 0
        %395 = vmatprep.subr.bf16.mxu0 0
        %396 = vmatpush1.bf16.msra.mxu0 0
        %397 = vmatprep.subr.bf16.mxu0 0
        %398 = vmatpush1.bf16.msra.mxu0 0
        %399 = vmatprep.subr.bf16.mxu0 0
        %400 = vmatpush1.bf16.msra.mxu0 0
        %401 = vmatprep.subr.bf16.mxu0 0
        %402 = vmatpush1.bf16.msra.mxu0 0
        %403 = vmatprep.subr.bf16.mxu0 0
        %404 = vmatpush1.bf16.msra.mxu0 0
        %405 = vmatprep.mubr.bf16.mxu0 0
        %406 = vmatmul.mubr.bf16.gmra.mrb[0].mxu0 %v371
        %v407 = vpop.f32.mrb[0].mxu0
        %v408 = vadd.f32 0.0, %v407
        %v409 = vpop.f32.mrb[0].mxu0
        %v410 = vpop.f32.mrb[0].mxu0
        %v411 = vpop.f32.mrb[0].mxu0
        %412 = vdwg.mxu0
        %v413 = vld [vmem:[%s323] sm:$0xf]
        %v414 = vld [vmem:[%s323 + $0x4] sm:$0xf]
        %v415 = vld [vmem:[%s323 + $0x8] sm:$0xf]
        %v416 = vld [vmem:[%s323 + $0xc] sm:$0xf]
        %v421 = vunpack.c.l.b16 %v413
        %v422 = vunpack.c.l.b16 %v414
        %v423 = vunpack.c.l.b16 %v415
        %v424 = vunpack.c.l.b16 %v416
        %v425 = vpack.c.b16 %v422, %v421
        %v426 = vpack.c.b16 %v424, %v423
        %429 = vmatprep.subr.bf16.mxu0 0
        %430 = vmatpush1.bf16.msra.mxu0 %v425
        %431 = vmatprep.subr.bf16.mxu0 0
        %432 = vmatpush1.bf16.msra.mxu0 %v426
        %433 = vmatprep.subr.bf16.mxu0 0
        %434 = vmatpush1.bf16.msra.mxu0 0
        %435 = vmatprep.subr.bf16.mxu0 0
        %436 = vmatpush1.bf16.msra.mxu0 0
        %437 = vmatprep.subr.bf16.mxu0 0
        %438 = vmatpush1.bf16.msra.mxu0 0
        %439 = vmatprep.subr.bf16.mxu0 0
        %440 = vmatpush1.bf16.msra.mxu0 0
        %441 = vmatprep.subr.bf16.mxu0 0
        %442 = vmatpush1.bf16.msra.mxu0 0
        %443 = vmatprep.subr.bf16.mxu0 0
        %444 = vmatpush1.bf16.msra.mxu0 0
        %445 = vmatprep.subr.bf16.mxu0 0
        %446 = vmatpush1.bf16.msra.mxu0 0
        %447 = vmatprep.subr.bf16.mxu0 0
        %448 = vmatpush1.bf16.msra.mxu0 0
        %449 = vmatprep.subr.bf16.mxu0 0
        %450 = vmatpush1.bf16.msra.mxu0 0
        %451 = vmatprep.subr.bf16.mxu0 0
        %452 = vmatpush1.bf16.msra.mxu0 0
        %453 = vmatprep.subr.bf16.mxu0 0
        %454 = vmatpush1.bf16.msra.mxu0 0
        %455 = vmatprep.subr.bf16.mxu0 0
        %456 = vmatpush1.bf16.msra.mxu0 0
        %457 = vmatprep.subr.bf16.mxu0 0
        %458 = vmatpush1.bf16.msra.mxu0 0
        %459 = vmatprep.subr.bf16.mxu0 0
        %460 = vmatpush1.bf16.msra.mxu0 0
        %461 = vmatprep.mubr.bf16.mxu0 0
        %462 = vmatmul.mubr.bf16.gmra.mrb[0].mxu0 %v371
        %v463 = vpop.f32.mrb[0].mxu0
        %v464 = vadd.f32 0.0, %v463
        %v465 = vpop.f32.mrb[0].mxu0
        %v466 = vpop.f32.mrb[0].mxu0
        %v467 = vpop.f32.mrb[0].mxu0
        %468 = vdwg.mxu0
        %v469 = vxor.u32 %v408, 2147483648
        %v470 = vmul.f32 %v469, 1.442695
        %v471 = vpow.pop %v470
        %v472 = vadd.f32 %v471, 1.0
        %v473 = vrcp.pop %v472
        %v474 = vmul.f32 1.0, %v473
        %v475 = vmul.f32 %v408, %v474
        %v476 = vmul.f32 %v475, %v464
        %v477 = vld [vmem:[#allocation2] sm:$0xff]
        %v478 = vpack.c.bf16 %v476, %v476
        %v479 = vld [vmem:[%s334] sm:$0xf]
        %v480 = vld [vmem:[%s334 + $0x4] sm:$0xf]
        %v481 = vld [vmem:[%s334 + $0x8] sm:$0xf]
        %v482 = vld [vmem:[%s334 + $0xc] sm:$0xf]
        %v483 = vld [vmem:[%s334 + $0x10] sm:$0xf]
        %v484 = vld [vmem:[%s334 + $0x14] sm:$0xf]
        %v485 = vld [vmem:[%s334 + $0x18] sm:$0xf]
        %v486 = vld [vmem:[%s334 + $0x1c] sm:$0xf]
        %v495 = vunpack.c.l.b16 %v479
        %v496 = vunpack.c.l.b16 %v480
        %v497 = vunpack.c.l.b16 %v481
        %v498 = vunpack.c.l.b16 %v482
        %v499 = vunpack.c.l.b16 %v483
        %v500 = vunpack.c.l.b16 %v484
        %v501 = vunpack.c.l.b16 %v485
        %v502 = vunpack.c.l.b16 %v486
        %v503 = vpack.c.b16 %v496, %v495
        %v504 = vpack.c.b16 %v498, %v497
        %v505 = vpack.c.b16 %v500, %v499
        %v506 = vpack.c.b16 %v502, %v501
        %vm511 = vcmask 523264
        %v513 = vsel %vm511, %v478, 0
        %515 = vmatprep.subr.bf16.mxu0 0
        %516 = vmatpush1.bf16.msra.mxu0 %v503
        %517 = vmatprep.subr.bf16.mxu0 0
        %518 = vmatpush1.bf16.msra.mxu0 %v504
        %519 = vmatprep.subr.bf16.mxu0 0
        %520 = vmatpush1.bf16.msra.mxu0 %v505
        %521 = vmatprep.subr.bf16.mxu0 0
        %522 = vmatpush1.bf16.msra.mxu0 %v506
        %523 = vmatprep.subr.bf16.mxu0 0
        %524 = vmatpush1.bf16.msra.mxu0 0
        %525 = vmatprep.subr.bf16.mxu0 0
        %526 = vmatpush1.bf16.msra.mxu0 0
        %527 = vmatprep.subr.bf16.mxu0 0
        %528 = vmatpush1.bf16.msra.mxu0 0
        %529 = vmatprep.subr.bf16.mxu0 0
        %530 = vmatpush1.bf16.msra.mxu0 0
        %531 = vmatprep.subr.bf16.mxu0 0
        %532 = vmatpush1.bf16.msra.mxu0 0
        %533 = vmatprep.subr.bf16.mxu0 0
        %534 = vmatpush1.bf16.msra.mxu0 0
        %535 = vmatprep.subr.bf16.mxu0 0
        %536 = vmatpush1.bf16.msra.mxu0 0
        %537 = vmatprep.subr.bf16.mxu0 0
        %538 = vmatpush1.bf16.msra.mxu0 0
        %539 = vmatprep.subr.bf16.mxu0 0
        %540 = vmatpush1.bf16.msra.mxu0 0
        %541 = vmatprep.subr.bf16.mxu0 0
        %542 = vmatpush1.bf16.msra.mxu0 0
        %543 = vmatprep.subr.bf16.mxu0 0
        %544 = vmatpush1.bf16.msra.mxu0 0
        %545 = vmatprep.subr.bf16.mxu0 0
        %546 = vmatpush1.bf16.msra.mxu0 0
        %547 = vmatprep.mubr.bf16.mxu0 0
        %548 = vmatmul.mubr.bf16.gmra.mrb[0].mxu0 %v513
        %v549 = vpop.f32.mrb[0].mxu0
        %v550 = vadd.f32 0.0, %v549
        %v551 = vpop.f32.mrb[0].mxu0
        %v552 = vpop.f32.mrb[0].mxu0
        %v553 = vpop.f32.mrb[0].mxu0
        %554 = vdwg.mxu0
        %v555 = vadd.f32 %v477, %v550
        %556 = vst.msk [vmem:[#allocation2] sm:$0xff] %vm369, %v555
      $region44: #{moe_forward.1} parent=35 // pred_fallthru
        _
      // Predicated region
      $region45: #{moe_forward.1} parent=35 // pred_check
        %p557 = pneg %p341
      $region46: #{moe_forward.1} parent=35 // pred_check_branch
        %559 = sbr.rel (%p557) target = $region48
      $region47: #{moe_forward.1} parent=35 // pred_region
        %v560 = vld [vmem:[#allocation2] sm:$0xff]
        %v561 = vpack.c.bf16 %v560, %v560
        %vm562 = vcmask 257024
        %563 = vst.msk [vmem:[%s339] sm:$0xf] %vm562, %v561
      $region48: #{moe_forward.1} parent=35 // pred_fallthru
        _
      %p564 = scmp.lt.s32.totalorder %s31, 10
      %s565 = scalar_select %p564, %s31, 10
      %s566 = smul.addr %s565, 4
      %s567 = scalar_lea.vmem %s6, %s566
      // Predicated region
      $region49: #{moe_forward.1} parent=35 // pred_check
        %p568 = pneg %p173
      $region50: #{moe_forward.1} parent=35 // pred_check_branch
        %570 = sbr.rel (%p568) target = $region52
      $region51: #{moe_forward.1} parent=35 // pred_region
        _
      $region52: #{moe_forward.1} parent=35 // pred_fallthru
        _
    $region36: #{moe_forward.1} parent=5 // pred_fallthru
      _
    %p571 = scmp.le.s32.totalorder 2, %s22
    // Predicated region
    $region53: #{moe_forward.1} parent=5 // pred_check
      %p572 = pneg %p571
    $region54: #{moe_forward.1} parent=5 // pred_check_branch
      %574 = sbr.rel (%p572) target = $region56
    $region55: #{moe_forward.1} parent=5 // pred_region
      %s575 = ssub.s32 %s22, 2
      // Predicated region
      $region57: #{moe_forward.1} parent=55 // pred_check
        %p576 = pneg %p179
      $region58: #{moe_forward.1} parent=55 // pred_check_branch
        %578 = sbr.rel (%p576) target = $region60
      $region59: #{moe_forward.1} parent=55 // pred_region
        %p579 = scmp.lt.s32.totalorder %s33, 10
        %s580 = scalar_select %p579, %s33, 10
        %s581 = smul.addr %s580, 4
        %s582 = scalar_lea.vmem %s6, %s581
      $region60: #{moe_forward.1} parent=55 // pred_fallthru
        _
    $region56: #{moe_forward.1} parent=5 // pred_fallthru
      _
  $region6: #{moe_forward.1} parent=0 // loop_footer
    %s26 = sadd.s32 1, %s22
  $region7: #{moe_forward.1} parent=0 // loop_footer_branch
    %21 = sbr.rel target = $region3
  $region8: #{moe_forward.1} parent=0 // loop_exit
    _

</llo_original>
